<compile_context>
chip_gen: v7x
topology: tpu7x:2x2x1
jax: 0.10.0
libtpu: 0.0.40
codegen_flags: <defaults>
</compile_context>

<pallas_src>
import functools

import jax
import jax.numpy as jnp
from jax.experimental import pallas as pl
from jax.experimental.pallas import tpu as pltpu


def _l21_res_kernel(a_ref, b_ref, o_ref, acc_all_ref, acc_col_ref, *,
                    n_rows, h_img, inv_ncw, inv_nch, inv_w,
                    need_row_mask, need_col_mask):
    step = pl.program_id(0)

    @pl.when(step == 0)
    def _init():
        acc_all_ref[...] = jnp.zeros_like(acc_all_ref)
        acc_col_ref[...] = jnp.zeros_like(acc_col_ref)

    tr, w = a_ref.shape
    d = a_ref[...].astype(jnp.float32) - b_ref[...].astype(jnp.float32)
    sq = d * d

    if need_row_mask:
        # Last grid block may run past the real number of rows: zero the padding.
        row_ids = step * tr + jax.lax.broadcasted_iota(jnp.int32, (tr, w), 0)
        sq = jnp.where(row_ids < n_rows, sq, 0.0)

    # Reduce over the sublane (row) axis first -> (1, W) per-column partial sums,
    # then a single lane reduce per accumulator (XLU work; VALU stays light).
    col_sums = jnp.sum(sq, axis=0, keepdims=True)

    acc_all_ref[...] += jnp.sum(col_sums, axis=1, keepdims=True)

    if need_col_mask:
        # Only columns 0..H-1 contribute to the "x2" (column-mean) term.
        col_ids = jax.lax.broadcasted_iota(jnp.int32, (1, w), 1)
        col_part = jnp.where(col_ids < h_img, col_sums, 0.0)
    else:
        col_part = col_sums
    acc_col_ref[...] += jnp.sum(col_part, axis=1, keepdims=True)

    @pl.when(step == pl.num_programs(0) - 1)
    def _finalize():
        o_ref[...] = ((acc_all_ref[...] * inv_ncw
                       + acc_col_ref[...] * inv_nch) * inv_w).astype(o_ref.dtype)


def _choose_tile_rows(n_rows, width, itemsize):
    # Keep each input block around <= 2 MiB so two double-buffered inputs stay
    # far below the scoped VMEM limit (also fine on v7x's 64 MiB VMEM).
    budget = 2 * 1024 * 1024
    tr = min(512, max(8, budget // max(1, width * itemsize)))
    tr = max(8, (tr // 8) * 8)          # (8, 128) tiling rule: sublane multiple of 8
    if n_rows <= tr:
        return n_rows                   # block == full dim is always legal
    return tr


def l21_res(img1, img2, *, tile_rows=None):
    """Pallas equivalent of L21_res().forward(img1, img2). Returns a scalar."""
    assert img1.shape == img2.shape and img1.ndim == 4, "expect (N, C, H, W) inputs"
    n, c, h, w = img1.shape
    if h > w:
        raise ValueError("L21_res requires H <= W (column index runs over H).")

    r = n * c * h
    a = img1.reshape(r, w)              # contiguous reshape: no data movement
    b = img2.reshape(r, w)

    itemsize = jnp.dtype(img1.dtype).itemsize
    if tile_rows is None:
        tile_rows = _choose_tile_rows(r, w, itemsize)
    grid = (pl.cdiv(r, tile_rows),)

    kernel = functools.partial(
        _l21_res_kernel,
        n_rows=r,
        h_img=h,
        inv_ncw=1.0 / (n * c * w),
        inv_nch=1.0 / (n * c * h),
        inv_w=1.0 / w,
        need_row_mask=(r % tile_rows != 0),
        need_col_mask=(h < w),
    )

    out = pl.pallas_call(
        kernel,
        out_shape=jax.ShapeDtypeStruct((1, 1), jnp.float32),
        grid=grid,
        in_specs=[pl.BlockSpec((tile_rows, w), lambda i: (i, 0)),
                  pl.BlockSpec((tile_rows, w), lambda i: (i, 0))],
        out_specs=pl.BlockSpec((1, 1), lambda i: (0, 0)),
        scratch_shapes=[pltpu.VMEM((1, 1), jnp.float32),
                        pltpu.VMEM((1, 1), jnp.float32)],
        compiler_params=pltpu.CompilerParams(
            # Single grid axis is the reduction axis (shared accumulator).
            dimension_semantics=("arbitrary",)),
    )(a, b)
    return out[0, 0]


if __name__ == "__main__":
    key = jax.random.PRNGKey(0)
    k1, k2 = jax.random.split(key)
    img1 = jax.random.normal(k1, (2, 4, 16, 16), dtype=jnp.float32)
    img2 = jax.random.normal(k2, (2, 4, 16, 16), dtype=jnp.float32)

    out = l21_res(img1, img2)
    out = jax.block_until_ready(out)

    # Pure-JAX reference replicating the PyTorch per-row/per-column loop.
    h, w = img1.shape[-2], img1.shape[-1]
    ref = 0.0
    for i in range(h):
        x1 = jnp.mean((img1[:, :, i, :] - img2[:, :, i, :]) ** 2)
        x2 = jnp.mean((img1[:, :, :, i] - img2[:, :, :, i]) ** 2)
        ref = ref + x2 + x1
    ref = ref / w

    assert out.shape == ()
    assert jnp.allclose(out, ref, atol=1e-5, rtol=1e-5), (out, ref)
    print("KERNEL_OK")
</pallas_src>

<mosaic_0001>
module attributes {stable_mosaic.version = 11 : i64} {
  func.func @_l21_res_kernel(%arg0: i32, %arg1: memref<128x16xf32, #tpu.memory_space<vmem>>, %arg2: memref<128x16xf32, #tpu.memory_space<vmem>>, %arg3: memref<1x1xf32, #tpu.memory_space<vmem>>, %arg4: memref<1x1xf32, #tpu.memory_space<vmem>>, %arg5: memref<1x1xf32, #tpu.memory_space<vmem>>) attributes {dimension_semantics = [#tpu.dimension_semantics<arbitrary>], iteration_bounds = array<i64: 1>, scalar_prefetch = 0 : i64, scratch_operands = 2 : i64, tpu.core_type = #tpu.core_type<tc>, window_params = [{transform_indices = @transform_0, window_bounds = array<i64: 128, 16>}, {transform_indices = @transform_1, window_bounds = array<i64: 128, 16>}, {pipeline_mode = #tpu.pipeline_mode<synchronous>, transform_indices = @transform_2, window_bounds = array<i64: 1, 1>}]} {
    %c0_i32 = arith.constant 0 : i32
    %0 = arith.cmpi eq, %arg0, %c0_i32 : i32
    %1 = arith.extui %0 : i1 to i32
    %c0_i32_0 = arith.constant 0 : i32
    %2 = arith.cmpi ne, %1, %c0_i32_0 : i32
    scf.if %2 {
      %cst_16 = arith.constant 0.000000e+00 : f32
      %22 = vector.broadcast %cst_16 : f32 to vector<1x1xf32>
      %c0_17 = arith.constant 0 : index
      %c0_18 = arith.constant 0 : index
      %23 = vector.load %arg4[%c0_17, %c0_18] : memref<1x1xf32, #tpu.memory_space<vmem>>, vector<1x1xf32>
      tpu.vector_store %arg4[%c0_17, %c0_18], %22 {strides = array<i32>} : memref<1x1xf32, #tpu.memory_space<vmem>>, vector<1x1xf32>,
      %cst_19 = arith.constant 0.000000e+00 : f32
      %24 = vector.broadcast %cst_19 : f32 to vector<1x1xf32>
      %c0_20 = arith.constant 0 : index
      %c0_21 = arith.constant 0 : index
      %25 = vector.load %arg5[%c0_20, %c0_21] : memref<1x1xf32, #tpu.memory_space<vmem>>, vector<1x1xf32>
      tpu.vector_store %arg5[%c0_20, %c0_21], %24 {strides = array<i32>} : memref<1x1xf32, #tpu.memory_space<vmem>>, vector<1x1xf32>,
    } else {
    }
    %c0 = arith.constant 0 : index
    %c0_1 = arith.constant 0 : index
    %3 = vector.load %arg1[%c0, %c0_1] : memref<128x16xf32, #tpu.memory_space<vmem>>, vector<128x16xf32>
    %c0_2 = arith.constant 0 : index
    %c0_3 = arith.constant 0 : index
    %4 = vector.load %arg2[%c0_2, %c0_3] : memref<128x16xf32, #tpu.memory_space<vmem>>, vector<128x16xf32>
    %5 = arith.subf %3, %4 : vector<128x16xf32>
    %6 = arith.mulf %5, %5 : vector<128x16xf32>
    %cst = arith.constant dense<0.000000e+00> : vector<16xf32>
    %7 = vector.multi_reduction <add>, %6, %cst [0] : vector<128x16xf32> to vector<16xf32>
    %8 = vector.shape_cast %7 : vector<16xf32> to vector<1x16xf32>
    %c0_4 = arith.constant 0 : index
    %c0_5 = arith.constant 0 : index
    %9 = vector.load %arg4[%c0_4, %c0_5] : memref<1x1xf32, #tpu.memory_space<vmem>>, vector<1x1xf32>
    %cst_6 = arith.constant dense<0.000000e+00> : vector<1xf32>
    %10 = vector.multi_reduction <add>, %8, %cst_6 [1] : vector<1x16xf32> to vector<1xf32>
    %11 = vector.shape_cast %10 : vector<1xf32> to vector<1x1xf32>
    %12 = arith.addf %9, %11 : vector<1x1xf32>
    %c0_7 = arith.constant 0 : index
    %c0_8 = arith.constant 0 : index
    %13 = vector.load %arg4[%c0_7, %c0_8] : memref<1x1xf32, #tpu.memory_space<vmem>>, vector<1x1xf32>
    tpu.vector_store %arg4[%c0_7, %c0_8], %12 {strides = array<i32>} : memref<1x1xf32, #tpu.memory_space<vmem>>, vector<1x1xf32>,
    %c0_9 = arith.constant 0 : index
    %c0_10 = arith.constant 0 : index
    %14 = vector.load %arg5[%c0_9, %c0_10] : memref<1x1xf32, #tpu.memory_space<vmem>>, vector<1x1xf32>
    %cst_11 = arith.constant dense<0.000000e+00> : vector<1xf32>
    %15 = vector.multi_reduction <add>, %8, %cst_11 [1] : vector<1x16xf32> to vector<1xf32>
    %16 = vector.shape_cast %15 : vector<1xf32> to vector<1x1xf32>
    %17 = arith.addf %14, %16 : vector<1x1xf32>
    %c0_12 = arith.constant 0 : index
    %c0_13 = arith.constant 0 : index
    %18 = vector.load %arg5[%c0_12, %c0_13] : memref<1x1xf32, #tpu.memory_space<vmem>>, vector<1x1xf32>
    tpu.vector_store %arg5[%c0_12, %c0_13], %17 {strides = array<i32>} : memref<1x1xf32, #tpu.memory_space<vmem>>, vector<1x1xf32>,
    %c0_i32_14 = arith.constant 0 : i32
    %19 = arith.cmpi eq, %arg0, %c0_i32_14 : i32
    %20 = arith.extui %19 : i1 to i32
    %c0_i32_15 = arith.constant 0 : i32
    %21 = arith.cmpi ne, %20, %c0_i32_15 : i32
    scf.if %21 {
      %c0_16 = arith.constant 0 : index
      %c0_17 = arith.constant 0 : index
      %22 = vector.load %arg4[%c0_16, %c0_17] : memref<1x1xf32, #tpu.memory_space<vmem>>, vector<1x1xf32>
      %cst_18 = arith.constant 7.812500e-03 : f32
      %23 = vector.broadcast %cst_18 : f32 to vector<1x1xf32>
      %24 = arith.mulf %22, %23 : vector<1x1xf32>
      %c0_19 = arith.constant 0 : index
      %c0_20 = arith.constant 0 : index
      %25 = vector.load %arg5[%c0_19, %c0_20] : memref<1x1xf32, #tpu.memory_space<vmem>>, vector<1x1xf32>
      %cst_21 = arith.constant 7.812500e-03 : f32
      %26 = vector.broadcast %cst_21 : f32 to vector<1x1xf32>
      %27 = arith.mulf %25, %26 : vector<1x1xf32>
      %28 = arith.addf %24, %27 : vector<1x1xf32>
      %cst_22 = arith.constant 6.250000e-02 : f32
      %29 = vector.broadcast %cst_22 : f32 to vector<1x1xf32>
      %30 = arith.mulf %28, %29 : vector<1x1xf32>
      %c0_23 = arith.constant 0 : index
      %c0_24 = arith.constant 0 : index
      %31 = vector.load %arg3[%c0_23, %c0_24] : memref<1x1xf32, #tpu.memory_space<vmem>>, vector<1x1xf32>
      tpu.vector_store %arg3[%c0_23, %c0_24], %30 {strides = array<i32>} : memref<1x1xf32, #tpu.memory_space<vmem>>, vector<1x1xf32>,
    } else {
    }
    return
  }
  func.func @transform_0(%arg0: i32) -> (i32, i32) {
    %c0_i32 = arith.constant 0 : i32
    %c0_i32_0 = arith.constant 0 : i32
    return %arg0, %c0_i32 : i32, i32
  }
  func.func @transform_1(%arg0: i32) -> (i32, i32) {
    %c0_i32 = arith.constant 0 : i32
    %c0_i32_0 = arith.constant 0 : i32
    return %arg0, %c0_i32 : i32, i32
  }
  func.func @transform_2(%arg0: i32) -> (i32, i32) {
    %c0_i32 = arith.constant 0 : i32
    %c0_i32_0 = arith.constant 0 : i32
    %c0_i32_1 = arith.constant 0 : i32
    return %c0_i32, %c0_i32_0 : i32, i32
  }
}

</mosaic_0001>

<llo_original>
// kernel: tpu_custom_call.1
$region0: #{tpu_custom_call.1}
  #allocation0 [shape = 'u32[]', space=smem, size = 0x4, offset = 0x4, fixed_abs, tag = 'smem constant byte address 0x4 - core index']
  #allocation1 [shape = 'u32[144,128]{1,0:T(1,128)}', space=vmem, size = 0x12000, scoped, tag = 'internal scratch']
  #allocation2 [shape = 'f32[1,1]{1,0:T(1,128)}', space=vmem, size = 0x200, scoped, tag = 'scratch operand']
  #allocation3 [shape = 'f32[1,1]{1,0:T(1,128)}', space=vmem, size = 0x200, scoped, tag = 'scratch operand']
  %s0 = inlined_call_operand.vmem [shape: f32[128,16], index: 0, kind: input, shape index: {}]
  %s1 = inlined_call_operand.vmem [shape: f32[128,16], index: 1, kind: input, shape index: {}]
  %s2 = inlined_call_operand.hbm [shape: f32[1,1], index: 2, kind: output, shape index: {}]
  %s3 = sld [smem:[#allocation0]]
  $region26: #{tpu_custom_call.1} parent=0
    _
  %s5 = ssub.s32 1, %s3
  %s6 = scalar_select 0, %s5, %s3
  $region1: #{tpu_custom_call.1} parent=0
    #allocation4 [shape = 'u8[512]{0}', space=vmem, size = 0x400, scoped, tag = 'output window, operand 0, single buffered']
    #allocation5 [shape = 's32[1]{0}', space=sflag, size = 0x4, scoped, tag = 'scoped memory for tpu_custom_call.1']
    %7 = vsyncpa [#allocation5], 0
    // Predicated region
    $region2: #{tpu_custom_call.1} parent=1 // pred_check
      _
    $region3: #{tpu_custom_call.1} parent=1 // pred_check_branch
      %9 = sbr.rel (0) target = $region5
    $region4: #{tpu_custom_call.1} parent=1 // pred_region
      _
    $region5: #{tpu_custom_call.1} parent=1 // pred_fallthru
      _
    // Predicated region
    $region6: #{tpu_custom_call.1} parent=1 // pred_check
      _
    $region7: #{tpu_custom_call.1} parent=1 // pred_check_branch
      %11 = sbr.rel (0) target = $region9
    $region8: #{tpu_custom_call.1} parent=1 // pred_region
      _
    $region9: #{tpu_custom_call.1} parent=1 // pred_fallthru
      _
    %p12 = scmp.eq.s32.totalorder 0, 0
    // Predicated region
    $region10: #{tpu_custom_call.1} parent=1 // pred_check
      %p13 = pneg %p12
    $region11: #{tpu_custom_call.1} parent=1 // pred_check_branch
      %15 = sbr.rel (%p13) target = $region13
    $region12: #{tpu_custom_call.1} parent=1 // pred_region
      %vm16 = vcmask 0
      %17 = vst.msk [vmem:[#allocation2] sm:$0x1] %vm16, 0.0
      %18 = vst.msk [vmem:[#allocation3] sm:$0x1] %vm16, 0.0
    $region13: #{tpu_custom_call.1} parent=1 // pred_fallthru
      _
    %v19 = vld [vmem:[%s0] sm:$0xff]
    %v20 = vld [vmem:[%s0 + $0x8] sm:$0xff]
    %v21 = vld [vmem:[%s0 + $0x10] sm:$0xff]
    %v22 = vld [vmem:[%s0 + $0x18] sm:$0xff]
    %v23 = vld [vmem:[%s0 + $0x20] sm:$0xff]
    %v24 = vld [vmem:[%s0 + $0x28] sm:$0xff]
    %v25 = vld [vmem:[%s0 + $0x30] sm:$0xff]
    %v26 = vld [vmem:[%s0 + $0x38] sm:$0xff]
    %v27 = vld [vmem:[%s0 + $0x40] sm:$0xff]
    %v28 = vld [vmem:[%s0 + $0x48] sm:$0xff]
    %v29 = vld [vmem:[%s0 + $0x50] sm:$0xff]
    %v30 = vld [vmem:[%s0 + $0x58] sm:$0xff]
    %v31 = vld [vmem:[%s0 + $0x60] sm:$0xff]
    %v32 = vld [vmem:[%s0 + $0x68] sm:$0xff]
    %v33 = vld [vmem:[%s0 + $0x70] sm:$0xff]
    %v34 = vld [vmem:[%s0 + $0x78] sm:$0xff]
    %v35 = vld [vmem:[%s1] sm:$0xff]
    %v36 = vld [vmem:[%s1 + $0x8] sm:$0xff]
    %v37 = vld [vmem:[%s1 + $0x10] sm:$0xff]
    %v38 = vld [vmem:[%s1 + $0x18] sm:$0xff]
    %v39 = vld [vmem:[%s1 + $0x20] sm:$0xff]
    %v40 = vld [vmem:[%s1 + $0x28] sm:$0xff]
    %v41 = vld [vmem:[%s1 + $0x30] sm:$0xff]
    %v42 = vld [vmem:[%s1 + $0x38] sm:$0xff]
    %v43 = vld [vmem:[%s1 + $0x40] sm:$0xff]
    %v44 = vld [vmem:[%s1 + $0x48] sm:$0xff]
    %v45 = vld [vmem:[%s1 + $0x50] sm:$0xff]
    %v46 = vld [vmem:[%s1 + $0x58] sm:$0xff]
    %v47 = vld [vmem:[%s1 + $0x60] sm:$0xff]
    %v48 = vld [vmem:[%s1 + $0x68] sm:$0xff]
    %v49 = vld [vmem:[%s1 + $0x70] sm:$0xff]
    %v50 = vld [vmem:[%s1 + $0x78] sm:$0xff]
    %v51 = vsub.f32 %v19, %v35
    %v52 = vsub.f32 %v20, %v36
    %v53 = vsub.f32 %v21, %v37
    %v54 = vsub.f32 %v22, %v38
    %v55 = vsub.f32 %v23, %v39
    %v56 = vsub.f32 %v24, %v40
    %v57 = vsub.f32 %v25, %v41
    %v58 = vsub.f32 %v26, %v42
    %v59 = vsub.f32 %v27, %v43
    %v60 = vsub.f32 %v28, %v44
    %v61 = vsub.f32 %v29, %v45
    %v62 = vsub.f32 %v30, %v46
    %v63 = vsub.f32 %v31, %v47
    %v64 = vsub.f32 %v32, %v48
    %v65 = vsub.f32 %v33, %v49
    %v66 = vsub.f32 %v34, %v50
    %v67 = vmul.f32 %v51, %v51
    %v68 = vmul.f32 %v52, %v52
    %v69 = vmul.f32 %v53, %v53
    %v70 = vmul.f32 %v54, %v54
    %v71 = vmul.f32 %v55, %v55
    %v72 = vmul.f32 %v56, %v56
    %v73 = vmul.f32 %v57, %v57
    %v74 = vmul.f32 %v58, %v58
    %v75 = vmul.f32 %v59, %v59
    %v76 = vmul.f32 %v60, %v60
    %v77 = vmul.f32 %v61, %v61
    %v78 = vmul.f32 %v62, %v62
    %v79 = vmul.f32 %v63, %v63
    %v80 = vmul.f32 %v64, %v64
    %v81 = vmul.f32 %v65, %v65
    %v82 = vmul.f32 %v66, %v66
    %vm83 = vcmask 130048
    %v84 = vsel %vm83, %v67, 0.0
    %v85 = vsel %vm83, %v68, 0.0
    %v86 = vadd.f32 %v84, %v85
    %v87 = vsel %vm83, %v69, 0.0
    %v88 = vadd.f32 %v86, %v87
    %v89 = vsel %vm83, %v70, 0.0
    %v90 = vadd.f32 %v88, %v89
    %v91 = vsel %vm83, %v71, 0.0
    %v92 = vadd.f32 %v90, %v91
    %v93 = vsel %vm83, %v72, 0.0
    %v94 = vadd.f32 %v92, %v93
    %v95 = vsel %vm83, %v73, 0.0
    %v96 = vadd.f32 %v94, %v95
    %v97 = vsel %vm83, %v74, 0.0
    %v98 = vadd.f32 %v96, %v97
    %v99 = vsel %vm83, %v75, 0.0
    %v100 = vadd.f32 %v98, %v99
    %v101 = vsel %vm83, %v76, 0.0
    %v102 = vadd.f32 %v100, %v101
    %v103 = vsel %vm83, %v77, 0.0
    %v104 = vadd.f32 %v102, %v103
    %v105 = vsel %vm83, %v78, 0.0
    %v106 = vadd.f32 %v104, %v105
    %v107 = vsel %vm83, %v79, 0.0
    %v108 = vadd.f32 %v106, %v107
    %v109 = vsel %vm83, %v80, 0.0
    %v110 = vadd.f32 %v108, %v109
    %v111 = vsel %vm83, %v81, 0.0
    %v112 = vadd.f32 %v110, %v111
    %v113 = vsel %vm83, %v82, 0.0
    %v114 = vadd.f32 %v112, %v113
    %v115 = vrot.slane %v114, 4
    %v116 = vadd.f32 %v114, %v115
    %v117 = vrot.slane %v116, 2
    %v118 = vadd.f32 %v116, %v117
    %v119 = vrot.slane %v118, 1
    %v120 = vadd.f32 %v118, %v119
    %v121 = vld [vmem:[#allocation2] sm:$0x1]
    %v122 = vsel %vm83, %v120, 0.0
    %123 = vadd.xlane.f32.xlu0 %v122
    %v124 = vpop.xlane.xlu0 %123
    %v125 = vadd.f32 %v121, %v124
    %vm126 = vcmask 0
    %127 = vst.msk [vmem:[#allocation2] sm:$0x1] %vm126, %v125
    %v128 = vld [vmem:[#allocation3] sm:$0x1]
    %v129 = vadd.f32 %v128, %v124
    %130 = vst.msk [vmem:[#allocation3] sm:$0x1] %vm126, %v129
    // Predicated region
    $region14: #{tpu_custom_call.1} parent=1 // pred_check
      %p131 = pneg %p12
    $region15: #{tpu_custom_call.1} parent=1 // pred_check_branch
      %133 = sbr.rel (%p131) target = $region17
    $region16: #{tpu_custom_call.1} parent=1 // pred_region
      %v134 = vld [vmem:[#allocation2] sm:$0x1]
      %v135 = vmul.f32 %v134, 0.0078125
      %v136 = vld [vmem:[#allocation3] sm:$0x1]
      %v137 = vmul.f32 %v136, 0.0078125
      %v138 = vadd.f32 %v135, %v137
      %v139 = vmul.f32 %v138, 0.0625
      %140 = vst.msk [vmem:[#allocation4] sm:$0x1] %vm126, %v139
    $region17: #{tpu_custom_call.1} parent=1 // pred_fallthru
      _
    // Predicated region
    $region18: #{tpu_custom_call.1} parent=1 // pred_check
      _
    $region19: #{tpu_custom_call.1} parent=1 // pred_check_branch
      %142 = sbr.rel (0) target = $region21
    $region20: #{tpu_custom_call.1} parent=1 // pred_region
      %s144 = ssub.s32 16, 16
      %145 = vsyncadd [#allocation5], %s144
      %s147 = sshll.u32 [#allocation4], 4
      %s148 = int_to_ptr.vmem [resolvable:$true] %s147
      %150 = dma.vmem_to_hbm [thread:$0]  %s148, 16, %s2, [#allocation5]
    $region21: #{tpu_custom_call.1} parent=1 // pred_fallthru
      _
    // Predicated region
    $region22: #{tpu_custom_call.1} parent=1 // pred_check
      _
    $region23: #{tpu_custom_call.1} parent=1 // pred_check_branch
      %152 = sbr.rel (0) target = $region25
    $region24: #{tpu_custom_call.1} parent=1 // pred_region
      %153 = dma.done [#allocation5], 16
    $region25: #{tpu_custom_call.1} parent=1 // pred_fallthru
      _
    %154 = vsyncpa [#allocation5], 1

</llo_original>
